<compile_context>
chip_gen: v7x
topology: tpu7x:2x2x1
jax: 0.10.0
libtpu: 0.0.40
codegen_flags: <defaults>
</compile_context>

<pallas_src>
import jax
import jax.numpy as jnp
from jax.experimental import pallas as pl
from jax.experimental.pallas import tpu as pltpu

LANES = 128
SUBLANES = 8


def _round_up(x: int, m: int) -> int:
    return ((x + m - 1) // m) * m


def _make_sse_kernel(tile_rows: int, valid_rows: int):
    """Kernel emitting one (8, 128) partial-sum slab per grid step."""
    needs_mask = (valid_rows % tile_rows) != 0
    last_valid = valid_rows % tile_rows  # valid rows in the ragged last block

    groups = tile_rows // SUBLANES       # number of stacked (8,128) vregs
    n_acc = 1
    for cand in (8, 4, 2):               # independent accumulator slabs (ILP)
        if groups % cand == 0:
            n_acc = cand
            break

    def _reduce(sq):
        # VPU-only partial reduction with n_acc independent accumulation chains:
        # the leading-axis sum is a loop of elementwise vadds over n_acc*8 vregs
        # in flight, so latency is hidden; the final fold over n_acc is short.
        x = sq.reshape(groups // n_acc, n_acc, SUBLANES, LANES)
        acc = jnp.sum(x, axis=0)         # (n_acc, 8, 128)
        return jnp.sum(acc, axis=0)      # (8, 128)

    def kernel(pred_ref, h_ref, out_ref):
        p = pred_ref[...]
        h = h_ref[...]
        # Upcast only when needed (no-op for f32, mandatory for bf16 on v5e).
        if p.dtype != jnp.float32:
            p = p.astype(jnp.float32)
        if h.dtype != jnp.float32:
            h = h.astype(jnp.float32)

        d = p - h
        sq = d * d                       # (tile_rows, 128)

        if not needs_mask:
            out_ref[0, :, :] = _reduce(sq)
        else:
            last = pl.num_programs(0) - 1

            # Full blocks: unmasked fast path (no iota / compare / select).
            @pl.when(pl.program_id(0) != last)
            def _():
                out_ref[0, :, :] = _reduce(sq)

            # Ragged last block: zero rows past the true row count.  The valid
            # row count within this block is a compile-time constant, so no
            # program_id arithmetic is needed in the mask.
            @pl.when(pl.program_id(0) == last)
            def _():
                row_ids = jax.lax.broadcasted_iota(
                    jnp.int32, (tile_rows, LANES), 0)
                sq_m = jnp.where(row_ids < last_valid, sq, jnp.float32(0.0))
                out_ref[0, :, :] = _reduce(sq_m)

    return kernel


def pinn_loss(prediction, h_data, *, target_tile_rows=8192,
              vmem_limit_bytes=40 * 1024 * 1024):
    """Sum of squared errors: sum((prediction - h_data)**2) via Pallas."""
    assert prediction.shape == h_data.shape, (prediction.shape, h_data.shape)

    flat_p = jnp.ravel(prediction)
    flat_h = jnp.ravel(h_data)
    n = flat_p.shape[0]

    rows = n // LANES
    n_main = rows * LANES
    tail_n = n - n_main

    # Lane tail (< 128 elements): tiny, summed outside the kernel. Avoids the
    # old jnp.pad path that re-wrote both full inputs through HBM.
    tail_sse = None
    if tail_n:
        dt = (flat_p[n_main:] - flat_h[n_main:]).astype(jnp.float32)
        tail_sse = jnp.sum(dt * dt)

    if rows == 0:  # input smaller than one lane row: nothing for the kernel
        return tail_sse if tail_sse is not None else jnp.float32(0.0)

    if tail_n:
        # TODO(synk): a fully copy-free path for lane-unaligned n would DMA the
        # raw 1-D arrays manually; this prefix slice is a one-off copy that only
        # triggers when n % 128 != 0.
        p2d = flat_p[:n_main].reshape(rows, LANES)
        h2d = flat_h[:n_main].reshape(rows, LANES)
    else:
        p2d = flat_p.reshape(rows, LANES)   # aligned: free reshape, no HBM copy
        h2d = flat_h.reshape(rows, LANES)

    # ---- tile-size selection -------------------------------------------------
    tile_rows = min(int(target_tile_rows), _round_up(rows, SUBLANES))
    tile_rows = max(SUBLANES, _round_up(tile_rows, SUBLANES))
    # Give the "parallel" grid axis >=4 blocks for large inputs so both v7x
    # TensorCores stay fed, but never shrink a block below 1024 rows (512 KiB
    # per input, still well above the ~0.35 us per-step overhead).
    MIN_SPLIT_ROWS = 1024
    if rows >= 4 * MIN_SPLIT_ROWS:
        tile_rows = min(
            tile_rows,
            max(MIN_SPLIT_ROWS, _round_up(pl.cdiv(rows, 4), SUBLANES)))
    num_blocks = pl.cdiv(rows, tile_rows)   # ragged last block masked in-kernel

    kernel = _make_sse_kernel(tile_rows, rows)

    itemsize = p2d.dtype.itemsize
    cost = pl.CostEstimate(
        flops=3 * rows * LANES,
        transcendentals=0,
        bytes_accessed=(2 * rows * LANES * itemsize
                        + num_blocks * SUBLANES * LANES * 4),
    )

    partials = pl.pallas_call(
        kernel,
        out_shape=jax.ShapeDtypeStruct((num_blocks, SUBLANES, LANES),
                                       jnp.float32),
        grid_spec=pltpu.PrefetchScalarGridSpec(
            num_scalar_prefetch=0,
            grid=(num_blocks,),
            in_specs=[
                pl.BlockSpec((tile_rows, LANES), lambda i: (i, 0)),
                pl.BlockSpec((tile_rows, LANES), lambda i: (i, 0)),
            ],
            out_specs=pl.BlockSpec((1, SUBLANES, LANES), lambda i: (i, 0, 0)),
        ),
        compiler_params=pltpu.CompilerParams(
            # Independent per-block partials -> parallel axis (sharded across
            # both TensorCores on v7x; harmless on v5e/v6e).
            dimension_semantics=("parallel",),
            # 2 inputs x 2 pipeline buffers x <=4 MiB blocks stays well under
            # this, and this limit is v7x-safe (64 MiB VMEM per TC).
            vmem_limit_bytes=vmem_limit_bytes,
        ),
        cost_estimate=cost,
    )(p2d, h2d)

    # Tiny final reduction over the (num_blocks, 8, 128) partials slab.
    total = jnp.sum(partials)
    if tail_sse is not None:
        total = total + tail_sse
    return total


class PINNLossFunc:
    """JAX/Pallas port of the PyTorch PINNLossFunc module (sum reduction)."""

    def __init__(self, h_data_choose):
        self.h_data = h_data_choose

    def __call__(self, prediction):
        return pinn_loss(prediction, self.h_data)


if __name__ == "__main__":
    key = jax.random.PRNGKey(0)
    k1, k2, k3, k4, k5, k6 = jax.random.split(key, 6)

    # Main check: small PINN-like field [B, C, H, W]
    shape = (2, 4, 16, 16)
    prediction = jax.random.normal(k1, shape, dtype=jnp.float32)
    h_data = jax.random.normal(k2, shape, dtype=jnp.float32)

    loss_fn = PINNLossFunc(h_data)
    sse = jax.block_until_ready(loss_fn(prediction))
    ref = jnp.sum((prediction - h_data) ** 2)
    assert jnp.allclose(sse, ref, rtol=1e-5, atol=1e-5), (sse, ref)

    # Secondary check: multi-block grid with a ragged (masked) last block.
    p2 = jax.random.normal(k3, (5, 1024), dtype=jnp.float32)   # 40 rows
    h2 = jax.random.normal(k4, (5, 1024), dtype=jnp.float32)
    out2 = jax.block_until_ready(
        pinn_loss(p2, h2, target_tile_rows=16))  # 3 blocks, last masked
    ref2 = jnp.sum((p2 - h2) ** 2)
    assert jnp.allclose(out2, ref2, rtol=1e-5, atol=1e-5), (out2, ref2)

    # Secondary check: lane-unaligned element count (out-of-kernel tail sum,
    # plus a ragged single-block kernel on the aligned prefix).
    p3 = jax.random.normal(k5, (7, 130), dtype=jnp.float32)
    h3 = jax.random.normal(k6, (7, 130), dtype=jnp.float32)
    out3 = jax.block_until_ready(pinn_loss(p3, h3))
    ref3 = jnp.sum((p3 - h3) ** 2)
    assert jnp.allclose(out3, ref3, rtol=1e-5, atol=1e-5), (out3, ref3)

    print("KERNEL_OK")
</pallas_src>

<mosaic_0001>
module attributes {stable_mosaic.version = 11 : i64} {
  func.func @kernel(%arg0: i32, %arg1: memref<16x128xf32, #tpu.memory_space<vmem>>, %arg2: memref<16x128xf32, #tpu.memory_space<vmem>>, %arg3: memref<1x8x128xf32, #tpu.memory_space<vmem>>) attributes {dimension_semantics = [#tpu.dimension_semantics<parallel>], iteration_bounds = array<i64: 1>, scalar_prefetch = 0 : i64, scratch_operands = 0 : i64, tpu.core_type = #tpu.core_type<tc>, window_params = [{transform_indices = @transform_0, window_bounds = array<i64: 16, 128>}, {transform_indices = @transform_1, window_bounds = array<i64: 16, 128>}, {transform_indices = @transform_2, window_bounds = array<i64: 1, 8, 128>}]} {
    %c0 = arith.constant 0 : index
    %c0_0 = arith.constant 0 : index
    %0 = vector.load %arg1[%c0, %c0_0] : memref<16x128xf32, #tpu.memory_space<vmem>>, vector<16x128xf32>
    %c0_1 = arith.constant 0 : index
    %c0_2 = arith.constant 0 : index
    %1 = vector.load %arg2[%c0_1, %c0_2] : memref<16x128xf32, #tpu.memory_space<vmem>>, vector<16x128xf32>
    %2 = arith.subf %0, %1 : vector<16x128xf32>
    %3 = arith.mulf %2, %2 : vector<16x128xf32>
    %4 = vector.shape_cast %3 : vector<16x128xf32> to vector<1x2x8x128xf32>
    %cst = arith.constant dense<0.000000e+00> : vector<2x8x128xf32>
    %5 = vector.multi_reduction <add>, %4, %cst [0] : vector<1x2x8x128xf32> to vector<2x8x128xf32>
    %cst_3 = arith.constant dense<0.000000e+00> : vector<8x128xf32>
    %6 = vector.multi_reduction <add>, %5, %cst_3 [0] : vector<2x8x128xf32> to vector<8x128xf32>
    %c0_4 = arith.constant 0 : index
    %c0_5 = arith.constant 0 : index
    %c0_6 = arith.constant 0 : index
    %7 = vector.load %arg3[%c0_4, %c0_5, %c0_6] : memref<1x8x128xf32, #tpu.memory_space<vmem>>, vector<1x8x128xf32>
    %8 = vector.shape_cast %7 : vector<1x8x128xf32> to vector<8x128xf32>
    %9 = vector.shape_cast %6 : vector<8x128xf32> to vector<1x8x128xf32>
    tpu.vector_store %arg3[%c0_4, %c0_5, %c0_6], %9 {strides = array<i32>} : memref<1x8x128xf32, #tpu.memory_space<vmem>>, vector<1x8x128xf32>,
    return
  }
  func.func @transform_0(%arg0: i32) -> (i32, i32) {
    %c0_i32 = arith.constant 0 : i32
    %c0_i32_0 = arith.constant 0 : i32
    return %arg0, %c0_i32 : i32, i32
  }
  func.func @transform_1(%arg0: i32) -> (i32, i32) {
    %c0_i32 = arith.constant 0 : i32
    %c0_i32_0 = arith.constant 0 : i32
    return %arg0, %c0_i32 : i32, i32
  }
  func.func @transform_2(%arg0: i32) -> (i32, i32, i32) {
    %c0_i32 = arith.constant 0 : i32
    %c0_i32_0 = arith.constant 0 : i32
    %c0_i32_1 = arith.constant 0 : i32
    return %arg0, %c0_i32, %c0_i32_0 : i32, i32, i32
  }
}

</mosaic_0001>

<llo_original>
// kernel: tpu_custom_call.1
$region0: #{tpu_custom_call.1}
  #allocation0 [shape = 'u32[]', space=smem, size = 0x4, offset = 0x4, fixed_abs, tag = 'smem constant byte address 0x4 - core index']
  #allocation1 [shape = 'u32[144,128]{1,0:T(1,128)}', space=vmem, size = 0x12000, scoped, tag = 'internal scratch']
  %s0 = inlined_call_operand.hbm [shape: f32[16,128], index: 0, kind: input, shape index: {}]
  %s1 = inlined_call_operand.hbm [shape: f32[16,128], index: 1, kind: input, shape index: {}]
  %s2 = inlined_call_operand.hbm [shape: f32[1,8,128], index: 2, kind: output, shape index: {}]
  %s3 = sld [smem:[#allocation0]]
  $region26: #{tpu_custom_call.1} parent=0
    _
  %s5 = ssub.s32 1, %s3
  %s6 = scalar_select 0, %s5, %s3
  $region1: #{tpu_custom_call.1} parent=0
    #allocation2 [shape = 'u8[8192]{0}', space=vmem, size = 0x2000, scoped, tag = 'input window, operand 0, single buffered']
    #allocation3 [shape = 's32[1]{0}', space=sflag, size = 0x4, scoped, tag = 'scoped memory for tpu_custom_call.1']
    #allocation4 [shape = 's32[1]{0}', space=sflag, size = 0x4, scoped, tag = 'scoped memory for tpu_custom_call.1']
    #allocation5 [shape = 'u8[8192]{0}', space=vmem, size = 0x2000, scoped, tag = 'input window, operand 1, single buffered']
    #allocation6 [shape = 's32[1]{0}', space=sflag, size = 0x4, scoped, tag = 'scoped memory for tpu_custom_call.1']
    #allocation7 [shape = 'u8[4096]{0}', space=vmem, size = 0x1000, scoped, tag = 'output window, operand 0, single buffered']
    %7 = vsyncpa [#allocation3], 0
    %8 = vsyncpa [#allocation6], 0
    %9 = vsyncpa [#allocation4], 0
    // Predicated region
    $region2: #{tpu_custom_call.1} parent=1 // pred_check
      _
    $region3: #{tpu_custom_call.1} parent=1 // pred_check_branch
      %11 = sbr.rel (0) target = $region5
    $region4: #{tpu_custom_call.1} parent=1 // pred_region
      %s13 = ssub.s32 256, 256
      %14 = vsyncadd [#allocation3], %s13
      %s15 = sshll.u32 [#allocation2], 4
      %s16 = int_to_ptr.vmem [resolvable:$true] %s15
      %21 = dma.hbm_to_vmem [thread:$0]  %s0, 256, %s16, [#allocation3], 128, 128, 8
    $region5: #{tpu_custom_call.1} parent=1 // pred_fallthru
      _
    // Predicated region
    $region6: #{tpu_custom_call.1} parent=1 // pred_check
      _
    $region7: #{tpu_custom_call.1} parent=1 // pred_check_branch
      %23 = sbr.rel (0) target = $region9
    $region8: #{tpu_custom_call.1} parent=1 // pred_region
      %s25 = ssub.s32 256, 256
      %26 = vsyncadd [#allocation6], %s25
      %s27 = sshll.u32 [#allocation5], 4
      %s28 = int_to_ptr.vmem [resolvable:$true] %s27
      %33 = dma.hbm_to_vmem [thread:$0]  %s1, 256, %s28, [#allocation6], 128, 128, 8
    $region9: #{tpu_custom_call.1} parent=1 // pred_fallthru
      _
    // Predicated region
    $region10: #{tpu_custom_call.1} parent=1 // pred_check
      _
    $region11: #{tpu_custom_call.1} parent=1 // pred_check_branch
      %35 = sbr.rel (0) target = $region13
    $region12: #{tpu_custom_call.1} parent=1 // pred_region
      %36 = dma.done [#allocation3], 256
    $region13: #{tpu_custom_call.1} parent=1 // pred_fallthru
      _
    // Predicated region
    $region14: #{tpu_custom_call.1} parent=1 // pred_check
      _
    $region15: #{tpu_custom_call.1} parent=1 // pred_check_branch
      %38 = sbr.rel (0) target = $region17
    $region16: #{tpu_custom_call.1} parent=1 // pred_region
      %39 = dma.done [#allocation6], 256
    $region17: #{tpu_custom_call.1} parent=1 // pred_fallthru
      _
    %v40 = vld [vmem:[#allocation2] sm:$0xff]
    %v41 = vld [vmem:[#allocation2 + $0x8] sm:$0xff]
    %v42 = vld [vmem:[#allocation5] sm:$0xff]
    %v43 = vld [vmem:[#allocation5 + $0x8] sm:$0xff]
    %v44 = vsub.f32 %v40, %v42
    %v45 = vsub.f32 %v41, %v43
    %v46 = vmul.f32 %v44, %v44
    %v47 = vmul.f32 %v45, %v45
    %v48 = vadd.f32 %v46, 0.0
    %v49 = vadd.f32 %v47, 0.0
    %v50 = vadd.f32 %v48, %v49
    %51 = vst [vmem:[#allocation7] sm:$0xff] %v50
    // Predicated region
    $region18: #{tpu_custom_call.1} parent=1 // pred_check
      _
    $region19: #{tpu_custom_call.1} parent=1 // pred_check_branch
      %53 = sbr.rel (0) target = $region21
    $region20: #{tpu_custom_call.1} parent=1 // pred_region
      %s55 = ssub.s32 128, 128
      %56 = vsyncadd [#allocation4], %s55
      %s58 = sshll.u32 [#allocation7], 4
      %s59 = int_to_ptr.vmem [resolvable:$true] %s58
      %61 = dma.vmem_to_hbm [thread:$0]  %s59, 128, %s2, [#allocation4]
    $region21: #{tpu_custom_call.1} parent=1 // pred_fallthru
      _
    // Predicated region
    $region22: #{tpu_custom_call.1} parent=1 // pred_check
      _
    $region23: #{tpu_custom_call.1} parent=1 // pred_check_branch
      %63 = sbr.rel (0) target = $region25
    $region24: #{tpu_custom_call.1} parent=1 // pred_region
      %64 = dma.done [#allocation4], 128
    $region25: #{tpu_custom_call.1} parent=1 // pred_fallthru
      _
    %65 = vsyncpa [#allocation3], 1
    %66 = vsyncpa [#allocation6], 1
    %67 = vsyncpa [#allocation4], 1

</llo_original>
